<compile_context>
chip_gen: v5e
topology: v5e:2x2
jax: 0.10.0
libtpu: 0.0.40
codegen_flags: <defaults>
</compile_context>

<pallas_src>
import jax
import jax.numpy as jnp
from jax.experimental import pallas as pl
from jax.experimental.pallas import tpu as pltpu

IN_FEATURES = 2305
OUT_FEATURES = 1


def pnet_kernel(x_ref, w_ref, o_ref):
    # (TB, K) @ (K, 1) -> (TB, 1), accumulated in f32 on the MXU.  The kernel
    # is memory-bound, so the matmul itself is hidden under the x-tile DMA.
    o_ref[...] = jnp.dot(
        x_ref[...], w_ref[...], preferred_element_type=jnp.float32
    ).astype(o_ref.dtype)


def pnet_forward(x, w_t, *, tb=512):
    """Forward pass of PNet (Linear 2305 -> 1, no bias).

    x:   (B, 2305) activations (features on the lane axis).
    w_t: (2305, 1)  transposed weight (fc1.weight.T) so we compute x @ w_t.
    Returns (B, 1).
    """
    B, K = x.shape
    assert K == IN_FEATURES
    assert w_t.shape == (IN_FEATURES, OUT_FEATURES)
    assert tb % 8 == 0

    # Effective batch tile: stream x in (tb, K) row tiles so the auto-pipeline
    # can double-buffer HBM DMA against compute.  For tiny B just take the
    # whole array as one full-extent block (exempt from the (8,128) rule).
    tb_eff = min(tb, B)
    grid = (pl.cdiv(B, tb_eff),)

    # Advisory cost hint so XLA schedules sensibly around the custom call.
    cost = pl.CostEstimate(
        flops=2 * B * K * OUT_FEATURES,
        transcendentals=0,
        bytes_accessed=4 * (B * K + K * OUT_FEATURES + B * OUT_FEATURES),
    )

    return pl.pallas_call(
        pnet_kernel,
        out_shape=jax.ShapeDtypeStruct((B, OUT_FEATURES), x.dtype),
        grid=grid,
        in_specs=[
            # x: tiled over batch; K=2305 is a full-extent block so the 128
            # lane-divisibility constraint does not apply to it.
            pl.BlockSpec((tb_eff, K), lambda i: (i, 0)),
            # w_t: ~9 KiB, resident across the whole grid (same block index).
            pl.BlockSpec((K, OUT_FEATURES), lambda i: (0, 0)),
        ],
        out_specs=pl.BlockSpec((tb_eff, OUT_FEATURES), lambda i: (i, 0)),
        compiler_params=pltpu.CompilerParams(
            # Batch tiles are independent -> "parallel" lets v7x's two
            # TensorCores shard the grid; harmless no-op on v5e/v6e.
            dimension_semantics=("parallel",),
            # TB=512 double-buffered x tiles ~= 9.4 MiB; 32 MiB leaves plenty
            # of headroom on every generation (and lifts v5e's 16 MiB default
            # scoped limit enough for this tile size).
            vmem_limit_bytes=32 * 1024 * 1024,
        ),
        cost_estimate=cost,
    )(x, w_t)


def init_pnet_params(key):
    # Mirrors torch.nn.Linear default init: U(-1/sqrt(K), 1/sqrt(K)),
    # weight shape (out_features, in_features) = (1, 2305).
    bound = 1.0 / (IN_FEATURES ** 0.5)
    w = jax.random.uniform(
        key, (OUT_FEATURES, IN_FEATURES), dtype=jnp.float32,
        minval=-bound, maxval=bound,
    )
    return w


if __name__ == "__main__":
    key = jax.random.PRNGKey(0)
    k_w, k_x, k_x2 = jax.random.split(key, 3)

    w = init_pnet_params(k_w)      # (1, 2305), like PyTorch fc1.weight
    w_t = jnp.transpose(w)         # (2305, 1) so the kernel computes x @ w.T

    # Small demo batch (single full-extent block path).
    B = 16
    x = jax.random.normal(k_x, (B, IN_FEATURES), dtype=jnp.float32)
    out = jax.block_until_ready(pnet_forward(x, w_t))
    ref = x @ w_t
    assert out.shape == (B, OUT_FEATURES)
    assert jnp.allclose(out, ref, atol=1e-5, rtol=1e-5)

    # Also exercise the tiled / partial-last-block pipeline path (B % TB != 0).
    B2 = 1040
    x2 = jax.random.normal(k_x2, (B2, IN_FEATURES), dtype=jnp.float32)
    out2 = jax.block_until_ready(pnet_forward(x2, w_t))
    ref2 = x2 @ w_t
    assert out2.shape == (B2, OUT_FEATURES)
    assert jnp.allclose(out2, ref2, atol=1e-5, rtol=1e-5)

    print("KERNEL_OK")
</pallas_src>

<mosaic_0001>
module attributes {stable_mosaic.version = 11 : i64} {
  func.func @pnet_kernel(%arg0: i32, %arg1: memref<16x2305xf32, #tpu.memory_space<vmem>>, %arg2: memref<2305x1xf32, #tpu.memory_space<vmem>>, %arg3: memref<16x1xf32, #tpu.memory_space<vmem>>) attributes {dimension_semantics = [#tpu.dimension_semantics<parallel>], iteration_bounds = array<i64: 1>, scalar_prefetch = 0 : i64, scratch_operands = 0 : i64, tpu.core_type = #tpu.core_type<tc>, window_params = [{transform_indices = @transform_0, window_bounds = array<i64: 16, 2305>}, {pipeline_mode = #tpu.pipeline_mode<synchronous>, transform_indices = @transform_1, window_bounds = array<i64: 2305, 1>}, {transform_indices = @transform_2, window_bounds = array<i64: 16, 1>}]} {
    %c0 = arith.constant 0 : index
    %c0_0 = arith.constant 0 : index
    %0 = vector.load %arg1[%c0, %c0_0] : memref<16x2305xf32, #tpu.memory_space<vmem>>, vector<16x2305xf32>
    %c0_1 = arith.constant 0 : index
    %c0_2 = arith.constant 0 : index
    %1 = vector.load %arg2[%c0_1, %c0_2] : memref<2305x1xf32, #tpu.memory_space<vmem>>, vector<2305x1xf32>
    %cst = arith.constant dense<0.000000e+00> : vector<16x1xf32>
    %2 = tpu.matmul %0, %1, %cst {dimension_numbers = #tpu.dot_dimension_numbers<[1], [0], [0], [1], [0, 0, 1, 1], [], []>} : vector<16x2305xf32>, vector<2305x1xf32>, vector<16x1xf32> -> vector<16x1xf32>
    %c0_3 = arith.constant 0 : index
    %c0_4 = arith.constant 0 : index
    %3 = vector.load %arg3[%c0_3, %c0_4] : memref<16x1xf32, #tpu.memory_space<vmem>>, vector<16x1xf32>
    tpu.vector_store %arg3[%c0_3, %c0_4], %2 {strides = array<i32>} : memref<16x1xf32, #tpu.memory_space<vmem>>, vector<16x1xf32>,
    return
  }
  func.func @transform_0(%arg0: i32) -> (i32, i32) {
    %c0_i32 = arith.constant 0 : i32
    %c0_i32_0 = arith.constant 0 : i32
    return %arg0, %c0_i32 : i32, i32
  }
  func.func @transform_1(%arg0: i32) -> (i32, i32) {
    %c0_i32 = arith.constant 0 : i32
    %c0_i32_0 = arith.constant 0 : i32
    %c0_i32_1 = arith.constant 0 : i32
    return %c0_i32, %c0_i32_0 : i32, i32
  }
  func.func @transform_2(%arg0: i32) -> (i32, i32) {
    %c0_i32 = arith.constant 0 : i32
    %c0_i32_0 = arith.constant 0 : i32
    return %arg0, %c0_i32 : i32, i32
  }
}

</mosaic_0001>

<llo_original>
// kernel: tpu_custom_call.1
$region0: #{tpu_custom_call.1}
  #allocation0 [shape = 'u32[]', space=smem, size = 0x4, offset = 0x4, fixed_abs, tag = 'smem constant byte address 0x4 - core index']
  #allocation1 [shape = 'u32[72,128]{1,0:T(1,128)}', space=vmem, size = 0x9000, scoped, tag = 'internal scratch']
  %s0 = inlined_call_operand.vmem [shape: f32[16,2305], index: 0, kind: input, shape index: {}]
  %s1 = inlined_call_operand.vmem [shape: f32[2305,1], index: 1, kind: input, shape index: {}]
  %s2 = inlined_call_operand.vmem [shape: f32[16,1], index: 2, kind: output, shape index: {}]
  %s3 = sld [smem:[#allocation0]]
  $region18: #{tpu_custom_call.1} parent=0
    _
  %s5 = ssub.s32 1, %s3
  %s6 = scalar_select 0, %s5, %s3
  // Predicated region
  $region2: #{tpu_custom_call.1} parent=0 // pred_check
    _
  $region3: #{tpu_custom_call.1} parent=0 // pred_check_branch
    %8 = sbr.rel (0) target = $region5
  $region4: #{tpu_custom_call.1} parent=0 // pred_region
    _
  $region5: #{tpu_custom_call.1} parent=0 // pred_fallthru
    _
  // Predicated region
  $region6: #{tpu_custom_call.1} parent=0 // pred_check
    _
  $region7: #{tpu_custom_call.1} parent=0 // pred_check_branch
    %10 = sbr.rel (0) target = $region9
  $region8: #{tpu_custom_call.1} parent=0 // pred_region
    _
  $region9: #{tpu_custom_call.1} parent=0 // pred_fallthru
    _
  %v11 = vld [vmem:[%s0] sm:$0xff]
  %v12 = vld [vmem:[%s0 + $0x8] sm:$0xff]
  %v13 = vld [vmem:[%s0 + $0x10] sm:$0xff]
  %v14 = vld [vmem:[%s0 + $0x18] sm:$0xff]
  %v15 = vld [vmem:[%s0 + $0x20] sm:$0xff]
  %v16 = vld [vmem:[%s0 + $0x28] sm:$0xff]
  %v17 = vld [vmem:[%s0 + $0x30] sm:$0xff]
  %v18 = vld [vmem:[%s0 + $0x38] sm:$0xff]
  %v19 = vld [vmem:[%s0 + $0x40] sm:$0xff]
  %v20 = vld [vmem:[%s0 + $0x48] sm:$0xff]
  %v21 = vld [vmem:[%s0 + $0x50] sm:$0xff]
  %v22 = vld [vmem:[%s0 + $0x58] sm:$0xff]
  %v23 = vld [vmem:[%s0 + $0x60] sm:$0xff]
  %v24 = vld [vmem:[%s0 + $0x68] sm:$0xff]
  %v25 = vld [vmem:[%s0 + $0x70] sm:$0xff]
  %v26 = vld [vmem:[%s0 + $0x78] sm:$0xff]
  %v27 = vld [vmem:[%s0 + $0x80] sm:$0xff]
  %v28 = vld [vmem:[%s0 + $0x88] sm:$0xff]
  %v29 = vld [vmem:[%s0 + $0x90] sm:$0xff]
  %v30 = vld [vmem:[%s0 + $0x98] sm:$0xff]
  %v31 = vld [vmem:[%s0 + $0xa0] sm:$0xff]
  %v32 = vld [vmem:[%s0 + $0xa8] sm:$0xff]
  %v33 = vld [vmem:[%s0 + $0xb0] sm:$0xff]
  %v34 = vld [vmem:[%s0 + $0xb8] sm:$0xff]
  %v35 = vld [vmem:[%s0 + $0xc0] sm:$0xff]
  %v36 = vld [vmem:[%s0 + $0xc8] sm:$0xff]
  %v37 = vld [vmem:[%s0 + $0xd0] sm:$0xff]
  %v38 = vld [vmem:[%s0 + $0xd8] sm:$0xff]
  %v39 = vld [vmem:[%s0 + $0xe0] sm:$0xff]
  %v40 = vld [vmem:[%s0 + $0xe8] sm:$0xff]
  %v41 = vld [vmem:[%s0 + $0xf0] sm:$0xff]
  %v42 = vld [vmem:[%s0 + $0xf8] sm:$0xff]
  %v43 = vld [vmem:[%s0 + $0x100] sm:$0xff]
  %v44 = vld [vmem:[%s0 + $0x108] sm:$0xff]
  %v45 = vld [vmem:[%s0 + $0x110] sm:$0xff]
  %v46 = vld [vmem:[%s0 + $0x118] sm:$0xff]
  %v47 = vld [vmem:[%s0 + $0x120] sm:$0xff]
  %v48 = vld [vmem:[%s0 + $0x128] sm:$0xff]
  %v49 = vld [vmem:[%s1] sm:$0xff]
  %v50 = vld [vmem:[%s1 + $0x8] sm:$0xff]
  %v51 = vld [vmem:[%s1 + $0x10] sm:$0xff]
  %v52 = vld [vmem:[%s1 + $0x18] sm:$0xff]
  %v53 = vld [vmem:[%s1 + $0x20] sm:$0xff]
  %v54 = vld [vmem:[%s1 + $0x28] sm:$0xff]
  %v55 = vld [vmem:[%s1 + $0x30] sm:$0xff]
  %v56 = vld [vmem:[%s1 + $0x38] sm:$0xff]
  %v57 = vld [vmem:[%s1 + $0x40] sm:$0xff]
  %v58 = vld [vmem:[%s1 + $0x48] sm:$0xff]
  %v59 = vld [vmem:[%s1 + $0x50] sm:$0xff]
  %v60 = vld [vmem:[%s1 + $0x58] sm:$0xff]
  %v61 = vld [vmem:[%s1 + $0x60] sm:$0xff]
  %v62 = vld [vmem:[%s1 + $0x68] sm:$0xff]
  %v63 = vld [vmem:[%s1 + $0x70] sm:$0xff]
  %v64 = vld [vmem:[%s1 + $0x78] sm:$0xff]
  %v65 = vld [vmem:[%s1 + $0x80] sm:$0xff]
  %v66 = vld [vmem:[%s1 + $0x88] sm:$0xff]
  %v67 = vld [vmem:[%s1 + $0x90] sm:$0xff]
  %v68 = vld [vmem:[%s1 + $0x98] sm:$0xff]
  %v69 = vld [vmem:[%s1 + $0xa0] sm:$0xff]
  %v70 = vld [vmem:[%s1 + $0xa8] sm:$0xff]
  %v71 = vld [vmem:[%s1 + $0xb0] sm:$0xff]
  %v72 = vld [vmem:[%s1 + $0xb8] sm:$0xff]
  %v73 = vld [vmem:[%s1 + $0xc0] sm:$0xff]
  %v74 = vld [vmem:[%s1 + $0xc8] sm:$0xff]
  %v75 = vld [vmem:[%s1 + $0xd0] sm:$0xff]
  %v76 = vld [vmem:[%s1 + $0xd8] sm:$0xff]
  %v77 = vld [vmem:[%s1 + $0xe0] sm:$0xff]
  %v78 = vld [vmem:[%s1 + $0xe8] sm:$0xff]
  %v79 = vld [vmem:[%s1 + $0xf0] sm:$0xff]
  %v80 = vld [vmem:[%s1 + $0xf8] sm:$0xff]
  %v81 = vld [vmem:[%s1 + $0x100] sm:$0xff]
  %v82 = vld [vmem:[%s1 + $0x108] sm:$0xff]
  %v83 = vld [vmem:[%s1 + $0x110] sm:$0xff]
  %v84 = vld [vmem:[%s1 + $0x118] sm:$0xff]
  %v85 = vld [vmem:[%s1 + $0x120] sm:$0xff]
  %v86 = vld [vmem:[%s1 + $0x128] sm:$0xff]
  %v87 = vld [vmem:[%s1 + $0x130] sm:$0xff]
  %v88 = vld [vmem:[%s1 + $0x138] sm:$0xff]
  %v89 = vld [vmem:[%s1 + $0x140] sm:$0xff]
  %v90 = vld [vmem:[%s1 + $0x148] sm:$0xff]
  %v91 = vld [vmem:[%s1 + $0x150] sm:$0xff]
  %v92 = vld [vmem:[%s1 + $0x158] sm:$0xff]
  %v93 = vld [vmem:[%s1 + $0x160] sm:$0xff]
  %v94 = vld [vmem:[%s1 + $0x168] sm:$0xff]
  %v95 = vld [vmem:[%s1 + $0x170] sm:$0xff]
  %v96 = vld [vmem:[%s1 + $0x178] sm:$0xff]
  %v97 = vld [vmem:[%s1 + $0x180] sm:$0xff]
  %v98 = vld [vmem:[%s1 + $0x188] sm:$0xff]
  %v99 = vld [vmem:[%s1 + $0x190] sm:$0xff]
  %v100 = vld [vmem:[%s1 + $0x198] sm:$0xff]
  %v101 = vld [vmem:[%s1 + $0x1a0] sm:$0xff]
  %v102 = vld [vmem:[%s1 + $0x1a8] sm:$0xff]
  %v103 = vld [vmem:[%s1 + $0x1b0] sm:$0xff]
  %v104 = vld [vmem:[%s1 + $0x1b8] sm:$0xff]
  %v105 = vld [vmem:[%s1 + $0x1c0] sm:$0xff]
  %v106 = vld [vmem:[%s1 + $0x1c8] sm:$0xff]
  %v107 = vld [vmem:[%s1 + $0x1d0] sm:$0xff]
  %v108 = vld [vmem:[%s1 + $0x1d8] sm:$0xff]
  %v109 = vld [vmem:[%s1 + $0x1e0] sm:$0xff]
  %v110 = vld [vmem:[%s1 + $0x1e8] sm:$0xff]
  %v111 = vld [vmem:[%s1 + $0x1f0] sm:$0xff]
  %v112 = vld [vmem:[%s1 + $0x1f8] sm:$0xff]
  %v113 = vld [vmem:[%s1 + $0x200] sm:$0xff]
  %v114 = vld [vmem:[%s1 + $0x208] sm:$0xff]
  %v115 = vld [vmem:[%s1 + $0x210] sm:$0xff]
  %v116 = vld [vmem:[%s1 + $0x218] sm:$0xff]
  %v117 = vld [vmem:[%s1 + $0x220] sm:$0xff]
  %v118 = vld [vmem:[%s1 + $0x228] sm:$0xff]
  %v119 = vld [vmem:[%s1 + $0x230] sm:$0xff]
  %v120 = vld [vmem:[%s1 + $0x238] sm:$0xff]
  %v121 = vld [vmem:[%s1 + $0x240] sm:$0xff]
  %v122 = vld [vmem:[%s1 + $0x248] sm:$0xff]
  %v123 = vld [vmem:[%s1 + $0x250] sm:$0xff]
  %v124 = vld [vmem:[%s1 + $0x258] sm:$0xff]
  %v125 = vld [vmem:[%s1 + $0x260] sm:$0xff]
  %v126 = vld [vmem:[%s1 + $0x268] sm:$0xff]
  %v127 = vld [vmem:[%s1 + $0x270] sm:$0xff]
  %v128 = vld [vmem:[%s1 + $0x278] sm:$0xff]
  %v129 = vld [vmem:[%s1 + $0x280] sm:$0xff]
  %v130 = vld [vmem:[%s1 + $0x288] sm:$0xff]
  %v131 = vld [vmem:[%s1 + $0x290] sm:$0xff]
  %v132 = vld [vmem:[%s1 + $0x298] sm:$0xff]
  %v133 = vld [vmem:[%s1 + $0x2a0] sm:$0xff]
  %v134 = vld [vmem:[%s1 + $0x2a8] sm:$0xff]
  %v135 = vld [vmem:[%s1 + $0x2b0] sm:$0xff]
  %v136 = vld [vmem:[%s1 + $0x2b8] sm:$0xff]
  %v137 = vld [vmem:[%s1 + $0x2c0] sm:$0xff]
  %v138 = vld [vmem:[%s1 + $0x2c8] sm:$0xff]
  %v139 = vld [vmem:[%s1 + $0x2d0] sm:$0xff]
  %v140 = vld [vmem:[%s1 + $0x2d8] sm:$0xff]
  %v141 = vld [vmem:[%s1 + $0x2e0] sm:$0xff]
  %v142 = vld [vmem:[%s1 + $0x2e8] sm:$0xff]
  %v143 = vld [vmem:[%s1 + $0x2f0] sm:$0xff]
  %v144 = vld [vmem:[%s1 + $0x2f8] sm:$0xff]
  %v145 = vld [vmem:[%s1 + $0x300] sm:$0xff]
  %v146 = vld [vmem:[%s1 + $0x308] sm:$0xff]
  %v147 = vld [vmem:[%s1 + $0x310] sm:$0xff]
  %v148 = vld [vmem:[%s1 + $0x318] sm:$0xff]
  %v149 = vld [vmem:[%s1 + $0x320] sm:$0xff]
  %v150 = vld [vmem:[%s1 + $0x328] sm:$0xff]
  %v151 = vld [vmem:[%s1 + $0x330] sm:$0xff]
  %v152 = vld [vmem:[%s1 + $0x338] sm:$0xff]
  %v153 = vld [vmem:[%s1 + $0x340] sm:$0xff]
  %v154 = vld [vmem:[%s1 + $0x348] sm:$0xff]
  %v155 = vld [vmem:[%s1 + $0x350] sm:$0xff]
  %v156 = vld [vmem:[%s1 + $0x358] sm:$0xff]
  %v157 = vld [vmem:[%s1 + $0x360] sm:$0xff]
  %v158 = vld [vmem:[%s1 + $0x368] sm:$0xff]
  %v159 = vld [vmem:[%s1 + $0x370] sm:$0xff]
  %v160 = vld [vmem:[%s1 + $0x378] sm:$0xff]
  %v161 = vld [vmem:[%s1 + $0x380] sm:$0xff]
  %v162 = vld [vmem:[%s1 + $0x388] sm:$0xff]
  %v163 = vld [vmem:[%s1 + $0x390] sm:$0xff]
  %v164 = vld [vmem:[%s1 + $0x398] sm:$0xff]
  %v165 = vld [vmem:[%s1 + $0x3a0] sm:$0xff]
  %v166 = vld [vmem:[%s1 + $0x3a8] sm:$0xff]
  %v167 = vld [vmem:[%s1 + $0x3b0] sm:$0xff]
  %v168 = vld [vmem:[%s1 + $0x3b8] sm:$0xff]
  %v169 = vld [vmem:[%s1 + $0x3c0] sm:$0xff]
  %v170 = vld [vmem:[%s1 + $0x3c8] sm:$0xff]
  %v171 = vld [vmem:[%s1 + $0x3d0] sm:$0xff]
  %v172 = vld [vmem:[%s1 + $0x3d8] sm:$0xff]
  %v173 = vld [vmem:[%s1 + $0x3e0] sm:$0xff]
  %v174 = vld [vmem:[%s1 + $0x3e8] sm:$0xff]
  %v175 = vld [vmem:[%s1 + $0x3f0] sm:$0xff]
  %v176 = vld [vmem:[%s1 + $0x3f8] sm:$0xff]
  %v177 = vld [vmem:[%s1 + $0x400] sm:$0xff]
  %v178 = vld [vmem:[%s1 + $0x408] sm:$0xff]
  %v179 = vld [vmem:[%s1 + $0x410] sm:$0xff]
  %v180 = vld [vmem:[%s1 + $0x418] sm:$0xff]
  %v181 = vld [vmem:[%s1 + $0x420] sm:$0xff]
  %v182 = vld [vmem:[%s1 + $0x428] sm:$0xff]
  %v183 = vld [vmem:[%s1 + $0x430] sm:$0xff]
  %v184 = vld [vmem:[%s1 + $0x438] sm:$0xff]
  %v185 = vld [vmem:[%s1 + $0x440] sm:$0xff]
  %v186 = vld [vmem:[%s1 + $0x448] sm:$0xff]
  %v187 = vld [vmem:[%s1 + $0x450] sm:$0xff]
  %v188 = vld [vmem:[%s1 + $0x458] sm:$0xff]
  %v189 = vld [vmem:[%s1 + $0x460] sm:$0xff]
  %v190 = vld [vmem:[%s1 + $0x468] sm:$0xff]
  %v191 = vld [vmem:[%s1 + $0x470] sm:$0xff]
  %v192 = vld [vmem:[%s1 + $0x478] sm:$0xff]
  %v193 = vld [vmem:[%s1 + $0x480] sm:$0xff]
  %v194 = vld [vmem:[%s1 + $0x488] sm:$0xff]
  %v195 = vld [vmem:[%s1 + $0x490] sm:$0xff]
  %v196 = vld [vmem:[%s1 + $0x498] sm:$0xff]
  %v197 = vld [vmem:[%s1 + $0x4a0] sm:$0xff]
  %v198 = vld [vmem:[%s1 + $0x4a8] sm:$0xff]
  %v199 = vld [vmem:[%s1 + $0x4b0] sm:$0xff]
  %v200 = vld [vmem:[%s1 + $0x4b8] sm:$0xff]
  %v201 = vld [vmem:[%s1 + $0x4c0] sm:$0xff]
  %v202 = vld [vmem:[%s1 + $0x4c8] sm:$0xff]
  %v203 = vld [vmem:[%s1 + $0x4d0] sm:$0xff]
  %v204 = vld [vmem:[%s1 + $0x4d8] sm:$0xff]
  %v205 = vld [vmem:[%s1 + $0x4e0] sm:$0xff]
  %v206 = vld [vmem:[%s1 + $0x4e8] sm:$0xff]
  %v207 = vld [vmem:[%s1 + $0x4f0] sm:$0xff]
  %v208 = vld [vmem:[%s1 + $0x4f8] sm:$0xff]
  %v209 = vld [vmem:[%s1 + $0x500] sm:$0xff]
  %v210 = vld [vmem:[%s1 + $0x508] sm:$0xff]
  %v211 = vld [vmem:[%s1 + $0x510] sm:$0xff]
  %v212 = vld [vmem:[%s1 + $0x518] sm:$0xff]
  %v213 = vld [vmem:[%s1 + $0x520] sm:$0xff]
  %v214 = vld [vmem:[%s1 + $0x528] sm:$0xff]
  %v215 = vld [vmem:[%s1 + $0x530] sm:$0xff]
  %v216 = vld [vmem:[%s1 + $0x538] sm:$0xff]
  %v217 = vld [vmem:[%s1 + $0x540] sm:$0xff]
  %v218 = vld [vmem:[%s1 + $0x548] sm:$0xff]
  %v219 = vld [vmem:[%s1 + $0x550] sm:$0xff]
  %v220 = vld [vmem:[%s1 + $0x558] sm:$0xff]
  %v221 = vld [vmem:[%s1 + $0x560] sm:$0xff]
  %v222 = vld [vmem:[%s1 + $0x568] sm:$0xff]
  %v223 = vld [vmem:[%s1 + $0x570] sm:$0xff]
  %v224 = vld [vmem:[%s1 + $0x578] sm:$0xff]
  %v225 = vld [vmem:[%s1 + $0x580] sm:$0xff]
  %v226 = vld [vmem:[%s1 + $0x588] sm:$0xff]
  %v227 = vld [vmem:[%s1 + $0x590] sm:$0xff]
  %v228 = vld [vmem:[%s1 + $0x598] sm:$0xff]
  %v229 = vld [vmem:[%s1 + $0x5a0] sm:$0xff]
  %v230 = vld [vmem:[%s1 + $0x5a8] sm:$0xff]
  %v231 = vld [vmem:[%s1 + $0x5b0] sm:$0xff]
  %v232 = vld [vmem:[%s1 + $0x5b8] sm:$0xff]
  %v233 = vld [vmem:[%s1 + $0x5c0] sm:$0xff]
  %v234 = vld [vmem:[%s1 + $0x5c8] sm:$0xff]
  %v235 = vld [vmem:[%s1 + $0x5d0] sm:$0xff]
  %v236 = vld [vmem:[%s1 + $0x5d8] sm:$0xff]
  %v237 = vld [vmem:[%s1 + $0x5e0] sm:$0xff]
  %v238 = vld [vmem:[%s1 + $0x5e8] sm:$0xff]
  %v239 = vld [vmem:[%s1 + $0x5f0] sm:$0xff]
  %v240 = vld [vmem:[%s1 + $0x5f8] sm:$0xff]
  %v241 = vld [vmem:[%s1 + $0x600] sm:$0xff]
  %v242 = vld [vmem:[%s1 + $0x608] sm:$0xff]
  %v243 = vld [vmem:[%s1 + $0x610] sm:$0xff]
  %v244 = vld [vmem:[%s1 + $0x618] sm:$0xff]
  %v245 = vld [vmem:[%s1 + $0x620] sm:$0xff]
  %v246 = vld [vmem:[%s1 + $0x628] sm:$0xff]
  %v247 = vld [vmem:[%s1 + $0x630] sm:$0xff]
  %v248 = vld [vmem:[%s1 + $0x638] sm:$0xff]
  %v249 = vld [vmem:[%s1 + $0x640] sm:$0xff]
  %v250 = vld [vmem:[%s1 + $0x648] sm:$0xff]
  %v251 = vld [vmem:[%s1 + $0x650] sm:$0xff]
  %v252 = vld [vmem:[%s1 + $0x658] sm:$0xff]
  %v253 = vld [vmem:[%s1 + $0x660] sm:$0xff]
  %v254 = vld [vmem:[%s1 + $0x668] sm:$0xff]
  %v255 = vld [vmem:[%s1 + $0x670] sm:$0xff]
  %v256 = vld [vmem:[%s1 + $0x678] sm:$0xff]
  %v257 = vld [vmem:[%s1 + $0x680] sm:$0xff]
  %v258 = vld [vmem:[%s1 + $0x688] sm:$0xff]
  %v259 = vld [vmem:[%s1 + $0x690] sm:$0xff]
  %v260 = vld [vmem:[%s1 + $0x698] sm:$0xff]
  %v261 = vld [vmem:[%s1 + $0x6a0] sm:$0xff]
  %v262 = vld [vmem:[%s1 + $0x6a8] sm:$0xff]
  %v263 = vld [vmem:[%s1 + $0x6b0] sm:$0xff]
  %v264 = vld [vmem:[%s1 + $0x6b8] sm:$0xff]
  %v265 = vld [vmem:[%s1 + $0x6c0] sm:$0xff]
  %v266 = vld [vmem:[%s1 + $0x6c8] sm:$0xff]
  %v267 = vld [vmem:[%s1 + $0x6d0] sm:$0xff]
  %v268 = vld [vmem:[%s1 + $0x6d8] sm:$0xff]
  %v269 = vld [vmem:[%s1 + $0x6e0] sm:$0xff]
  %v270 = vld [vmem:[%s1 + $0x6e8] sm:$0xff]
  %v271 = vld [vmem:[%s1 + $0x6f0] sm:$0xff]
  %v272 = vld [vmem:[%s1 + $0x6f8] sm:$0xff]
  %v273 = vld [vmem:[%s1 + $0x700] sm:$0xff]
  %v274 = vld [vmem:[%s1 + $0x708] sm:$0xff]
  %v275 = vld [vmem:[%s1 + $0x710] sm:$0xff]
  %v276 = vld [vmem:[%s1 + $0x718] sm:$0xff]
  %v277 = vld [vmem:[%s1 + $0x720] sm:$0xff]
  %v278 = vld [vmem:[%s1 + $0x728] sm:$0xff]
  %v279 = vld [vmem:[%s1 + $0x730] sm:$0xff]
  %v280 = vld [vmem:[%s1 + $0x738] sm:$0xff]
  %v281 = vld [vmem:[%s1 + $0x740] sm:$0xff]
  %v282 = vld [vmem:[%s1 + $0x748] sm:$0xff]
  %v283 = vld [vmem:[%s1 + $0x750] sm:$0xff]
  %v284 = vld [vmem:[%s1 + $0x758] sm:$0xff]
  %v285 = vld [vmem:[%s1 + $0x760] sm:$0xff]
  %v286 = vld [vmem:[%s1 + $0x768] sm:$0xff]
  %v287 = vld [vmem:[%s1 + $0x770] sm:$0xff]
  %v288 = vld [vmem:[%s1 + $0x778] sm:$0xff]
  %v289 = vld [vmem:[%s1 + $0x780] sm:$0xff]
  %v290 = vld [vmem:[%s1 + $0x788] sm:$0xff]
  %v291 = vld [vmem:[%s1 + $0x790] sm:$0xff]
  %v292 = vld [vmem:[%s1 + $0x798] sm:$0xff]
  %v293 = vld [vmem:[%s1 + $0x7a0] sm:$0xff]
  %v294 = vld [vmem:[%s1 + $0x7a8] sm:$0xff]
  %v295 = vld [vmem:[%s1 + $0x7b0] sm:$0xff]
  %v296 = vld [vmem:[%s1 + $0x7b8] sm:$0xff]
  %v297 = vld [vmem:[%s1 + $0x7c0] sm:$0xff]
  %v298 = vld [vmem:[%s1 + $0x7c8] sm:$0xff]
  %v299 = vld [vmem:[%s1 + $0x7d0] sm:$0xff]
  %v300 = vld [vmem:[%s1 + $0x7d8] sm:$0xff]
  %v301 = vld [vmem:[%s1 + $0x7e0] sm:$0xff]
  %v302 = vld [vmem:[%s1 + $0x7e8] sm:$0xff]
  %v303 = vld [vmem:[%s1 + $0x7f0] sm:$0xff]
  %v304 = vld [vmem:[%s1 + $0x7f8] sm:$0xff]
  %v305 = vld [vmem:[%s1 + $0x800] sm:$0xff]
  %v306 = vld [vmem:[%s1 + $0x808] sm:$0xff]
  %v307 = vld [vmem:[%s1 + $0x810] sm:$0xff]
  %v308 = vld [vmem:[%s1 + $0x818] sm:$0xff]
  %v309 = vld [vmem:[%s1 + $0x820] sm:$0xff]
  %v310 = vld [vmem:[%s1 + $0x828] sm:$0xff]
  %v311 = vld [vmem:[%s1 + $0x830] sm:$0xff]
  %v312 = vld [vmem:[%s1 + $0x838] sm:$0xff]
  %v313 = vld [vmem:[%s1 + $0x840] sm:$0xff]
  %v314 = vld [vmem:[%s1 + $0x848] sm:$0xff]
  %v315 = vld [vmem:[%s1 + $0x850] sm:$0xff]
  %v316 = vld [vmem:[%s1 + $0x858] sm:$0xff]
  %v317 = vld [vmem:[%s1 + $0x860] sm:$0xff]
  %v318 = vld [vmem:[%s1 + $0x868] sm:$0xff]
  %v319 = vld [vmem:[%s1 + $0x870] sm:$0xff]
  %v320 = vld [vmem:[%s1 + $0x878] sm:$0xff]
  %v321 = vld [vmem:[%s1 + $0x880] sm:$0xff]
  %v322 = vld [vmem:[%s1 + $0x888] sm:$0xff]
  %v323 = vld [vmem:[%s1 + $0x890] sm:$0xff]
  %v324 = vld [vmem:[%s1 + $0x898] sm:$0xff]
  %v325 = vld [vmem:[%s1 + $0x8a0] sm:$0xff]
  %v326 = vld [vmem:[%s1 + $0x8a8] sm:$0xff]
  %v327 = vld [vmem:[%s1 + $0x8b0] sm:$0xff]
  %v328 = vld [vmem:[%s1 + $0x8b8] sm:$0xff]
  %v329 = vld [vmem:[%s1 + $0x8c0] sm:$0xff]
  %v330 = vld [vmem:[%s1 + $0x8c8] sm:$0xff]
  %v331 = vld [vmem:[%s1 + $0x8d0] sm:$0xff]
  %v332 = vld [vmem:[%s1 + $0x8d8] sm:$0xff]
  %v333 = vld [vmem:[%s1 + $0x8e0] sm:$0xff]
  %v334 = vld [vmem:[%s1 + $0x8e8] sm:$0xff]
  %v335 = vld [vmem:[%s1 + $0x8f0] sm:$0xff]
  %v336 = vld [vmem:[%s1 + $0x8f8] sm:$0xff]
  %v337 = vld [vmem:[%s1 + $0x900] sm:$0x1]
  %vm338 = vcmask 7168
  %v340 = vsel %vm338, %v29, 0
  %v343 = vsel %vm338, %v48, 0
  %vm345 = vcmask 1040384
  %v347 = vsel %vm345, %v337, 0
  %349 = vmatpush.msra.mxu0 %v64
  %350 = vmatpush.msra.mxu0 %v63
  %351 = vmatpush.msra.mxu0 %v62
  %352 = vmatpush.msra.mxu0 %v61
  %353 = vmatpush.msra.mxu0 %v60
  %354 = vmatpush.msra.mxu0 %v59
  %355 = vmatpush.msra.mxu0 %v58
  %356 = vmatpush.msra.mxu0 %v57
  %357 = vmatpush.msra.mxu0 %v56
  %358 = vmatpush.msra.mxu0 %v55
  %359 = vmatpush.msra.mxu0 %v54
  %360 = vmatpush.msra.mxu0 %v53
  %361 = vmatpush.msra.mxu0 %v52
  %362 = vmatpush.msra.mxu0 %v51
  %363 = vmatpush.msra.mxu0 %v50
  %364 = vmatpush.msra.mxu0 %v49
  %365 = vmatmul.f32.gmra.mxu0 %v11
  %v366 = vpop.f32.mrf.mxu0
  %v367 = vadd.f32 0.0, %v366
  %368 = vmatmul.f32.gmra.mxu0 %v30
  %v369 = vpop.f32.mrf.mxu0
  %v370 = vadd.f32 0.0, %v369
  %371 = vdwg.mxu0
  %372 = vmatpush.msra.mxu0 %v80
  %373 = vmatpush.msra.mxu0 %v79
  %374 = vmatpush.msra.mxu0 %v78
  %375 = vmatpush.msra.mxu0 %v77
  %376 = vmatpush.msra.mxu0 %v76
  %377 = vmatpush.msra.mxu0 %v75
  %378 = vmatpush.msra.mxu0 %v74
  %379 = vmatpush.msra.mxu0 %v73
  %380 = vmatpush.msra.mxu0 %v72
  %381 = vmatpush.msra.mxu0 %v71
  %382 = vmatpush.msra.mxu0 %v70
  %383 = vmatpush.msra.mxu0 %v69
  %384 = vmatpush.msra.mxu0 %v68
  %385 = vmatpush.msra.mxu0 %v67
  %386 = vmatpush.msra.mxu0 %v66
  %387 = vmatpush.msra.mxu0 %v65
  %388 = vmatmul.f32.gmra.mxu0 %v12
  %v389 = vpop.f32.mrf.mxu0
  %v390 = vadd.f32 %v367, %v389
  %391 = vmatmul.f32.gmra.mxu0 %v31
  %v392 = vpop.f32.mrf.mxu0
  %v393 = vadd.f32 %v370, %v392
  %394 = vdwg.mxu0
  %395 = vmatpush.msra.mxu0 %v96
  %396 = vmatpush.msra.mxu0 %v95
  %397 = vmatpush.msra.mxu0 %v94
  %398 = vmatpush.msra.mxu0 %v93
  %399 = vmatpush.msra.mxu0 %v92
  %400 = vmatpush.msra.mxu0 %v91
  %401 = vmatpush.msra.mxu0 %v90
  %402 = vmatpush.msra.mxu0 %v89
  %403 = vmatpush.msra.mxu0 %v88
  %404 = vmatpush.msra.mxu0 %v87
  %405 = vmatpush.msra.mxu0 %v86
  %406 = vmatpush.msra.mxu0 %v85
  %407 = vmatpush.msra.mxu0 %v84
  %408 = vmatpush.msra.mxu0 %v83
  %409 = vmatpush.msra.mxu0 %v82
  %410 = vmatpush.msra.mxu0 %v81
  %411 = vmatmul.f32.gmra.mxu0 %v13
  %v412 = vpop.f32.mrf.mxu0
  %v413 = vadd.f32 %v390, %v412
  %414 = vmatmul.f32.gmra.mxu0 %v32
  %v415 = vpop.f32.mrf.mxu0
  %v416 = vadd.f32 %v393, %v415
  %417 = vdwg.mxu0
  %418 = vmatpush.msra.mxu0 %v112
  %419 = vmatpush.msra.mxu0 %v111
  %420 = vmatpush.msra.mxu0 %v110
  %421 = vmatpush.msra.mxu0 %v109
  %422 = vmatpush.msra.mxu0 %v108
  %423 = vmatpush.msra.mxu0 %v107
  %424 = vmatpush.msra.mxu0 %v106
  %425 = vmatpush.msra.mxu0 %v105
  %426 = vmatpush.msra.mxu0 %v104
  %427 = vmatpush.msra.mxu0 %v103
  %428 = vmatpush.msra.mxu0 %v102
  %429 = vmatpush.msra.mxu0 %v101
  %430 = vmatpush.msra.mxu0 %v100
  %431 = vmatpush.msra.mxu0 %v99
  %432 = vmatpush.msra.mxu0 %v98
  %433 = vmatpush.msra.mxu0 %v97
  %434 = vmatmul.f32.gmra.mxu0 %v14
  %v435 = vpop.f32.mrf.mxu0
  %v436 = vadd.f32 %v413, %v435
  %437 = vmatmul.f32.gmra.mxu0 %v33
  %v438 = vpop.f32.mrf.mxu0
  %v439 = vadd.f32 %v416, %v438
  %440 = vdwg.mxu0
  %441 = vmatpush.msra.mxu0 %v128
  %442 = vmatpush.msra.mxu0 %v127
  %443 = vmatpush.msra.mxu0 %v126
  %444 = vmatpush.msra.mxu0 %v125
  %445 = vmatpush.msra.mxu0 %v124
  %446 = vmatpush.msra.mxu0 %v123
  %447 = vmatpush.msra.mxu0 %v122
  %448 = vmatpush.msra.mxu0 %v121
  %449 = vmatpush.msra.mxu0 %v120
  %450 = vmatpush.msra.mxu0 %v119
  %451 = vmatpush.msra.mxu0 %v118
  %452 = vmatpush.msra.mxu0 %v117
  %453 = vmatpush.msra.mxu0 %v116
  %454 = vmatpush.msra.mxu0 %v115
  %455 = vmatpush.msra.mxu0 %v114
  %456 = vmatpush.msra.mxu0 %v113
  %457 = vmatmul.f32.gmra.mxu0 %v15
  %v458 = vpop.f32.mrf.mxu0
  %v459 = vadd.f32 %v436, %v458
  %460 = vmatmul.f32.gmra.mxu0 %v34
  %v461 = vpop.f32.mrf.mxu0
  %v462 = vadd.f32 %v439, %v461
  %463 = vdwg.mxu0
  %464 = vmatpush.msra.mxu0 %v144
  %465 = vmatpush.msra.mxu0 %v143
  %466 = vmatpush.msra.mxu0 %v142
  %467 = vmatpush.msra.mxu0 %v141
  %468 = vmatpush.msra.mxu0 %v140
  %469 = vmatpush.msra.mxu0 %v139
  %470 = vmatpush.msra.mxu0 %v138
  %471 = vmatpush.msra.mxu0 %v137
  %472 = vmatpush.msra.mxu0 %v136
  %473 = vmatpush.msra.mxu0 %v135
  %474 = vmatpush.msra.mxu0 %v134
  %475 = vmatpush.msra.mxu0 %v133
  %476 = vmatpush.msra.mxu0 %v132
  %477 = vmatpush.msra.mxu0 %v131
  %478 = vmatpush.msra.mxu0 %v130
  %479 = vmatpush.msra.mxu0 %v129
  %480 = vmatmul.f32.gmra.mxu0 %v16
  %v481 = vpop.f32.mrf.mxu0
  %v482 = vadd.f32 %v459, %v481
  %483 = vmatmul.f32.gmra.mxu0 %v35
  %v484 = vpop.f32.mrf.mxu0
  %v485 = vadd.f32 %v462, %v484
  %486 = vdwg.mxu0
  %487 = vmatpush.msra.mxu0 %v160
  %488 = vmatpush.msra.mxu0 %v159
  %489 = vmatpush.msra.mxu0 %v158
  %490 = vmatpush.msra.mxu0 %v157
  %491 = vmatpush.msra.mxu0 %v156
  %492 = vmatpush.msra.mxu0 %v155
  %493 = vmatpush.msra.mxu0 %v154
  %494 = vmatpush.msra.mxu0 %v153
  %495 = vmatpush.msra.mxu0 %v152
  %496 = vmatpush.msra.mxu0 %v151
  %497 = vmatpush.msra.mxu0 %v150
  %498 = vmatpush.msra.mxu0 %v149
  %499 = vmatpush.msra.mxu0 %v148
  %500 = vmatpush.msra.mxu0 %v147
  %501 = vmatpush.msra.mxu0 %v146
  %502 = vmatpush.msra.mxu0 %v145
  %503 = vmatmul.f32.gmra.mxu0 %v17
  %v504 = vpop.f32.mrf.mxu0
  %v505 = vadd.f32 %v482, %v504
  %506 = vmatmul.f32.gmra.mxu0 %v36
  %v507 = vpop.f32.mrf.mxu0
  %v508 = vadd.f32 %v485, %v507
  %509 = vdwg.mxu0
  %510 = vmatpush.msra.mxu0 %v176
  %511 = vmatpush.msra.mxu0 %v175
  %512 = vmatpush.msra.mxu0 %v174
  %513 = vmatpush.msra.mxu0 %v173
  %514 = vmatpush.msra.mxu0 %v172
  %515 = vmatpush.msra.mxu0 %v171
  %516 = vmatpush.msra.mxu0 %v170
  %517 = vmatpush.msra.mxu0 %v169
  %518 = vmatpush.msra.mxu0 %v168
  %519 = vmatpush.msra.mxu0 %v167
  %520 = vmatpush.msra.mxu0 %v166
  %521 = vmatpush.msra.mxu0 %v165
  %522 = vmatpush.msra.mxu0 %v164
  %523 = vmatpush.msra.mxu0 %v163
  %524 = vmatpush.msra.mxu0 %v162
  %525 = vmatpush.msra.mxu0 %v161
  %526 = vmatmul.f32.gmra.mxu0 %v18
  %v527 = vpop.f32.mrf.mxu0
  %v528 = vadd.f32 %v505, %v527
  %529 = vmatmul.f32.gmra.mxu0 %v37
  %v530 = vpop.f32.mrf.mxu0
  %v531 = vadd.f32 %v508, %v530
  %532 = vdwg.mxu0
  %533 = vmatpush.msra.mxu0 %v192
  %534 = vmatpush.msra.mxu0 %v191
  %535 = vmatpush.msra.mxu0 %v190
  %536 = vmatpush.msra.mxu0 %v189
  %537 = vmatpush.msra.mxu0 %v188
  %538 = vmatpush.msra.mxu0 %v187
  %539 = vmatpush.msra.mxu0 %v186
  %540 = vmatpush.msra.mxu0 %v185
  %541 = vmatpush.msra.mxu0 %v184
  %542 = vmatpush.msra.mxu0 %v183
  %543 = vmatpush.msra.mxu0 %v182
  %544 = vmatpush.msra.mxu0 %v181
  %545 = vmatpush.msra.mxu0 %v180
  %546 = vmatpush.msra.mxu0 %v179
  %547 = vmatpush.msra.mxu0 %v178
  %548 = vmatpush.msra.mxu0 %v177
  %549 = vmatmul.f32.gmra.mxu0 %v19
  %v550 = vpop.f32.mrf.mxu0
  %v551 = vadd.f32 %v528, %v550
  %552 = vmatmul.f32.gmra.mxu0 %v38
  %v553 = vpop.f32.mrf.mxu0
  %v554 = vadd.f32 %v531, %v553
  %555 = vdwg.mxu0
  %556 = vmatpush.msra.mxu0 %v208
  %557 = vmatpush.msra.mxu0 %v207
  %558 = vmatpush.msra.mxu0 %v206
  %559 = vmatpush.msra.mxu0 %v205
  %560 = vmatpush.msra.mxu0 %v204
  %561 = vmatpush.msra.mxu0 %v203
  %562 = vmatpush.msra.mxu0 %v202
  %563 = vmatpush.msra.mxu0 %v201
  %564 = vmatpush.msra.mxu0 %v200
  %565 = vmatpush.msra.mxu0 %v199
  %566 = vmatpush.msra.mxu0 %v198
  %567 = vmatpush.msra.mxu0 %v197
  %568 = vmatpush.msra.mxu0 %v196
  %569 = vmatpush.msra.mxu0 %v195
  %570 = vmatpush.msra.mxu0 %v194
  %571 = vmatpush.msra.mxu0 %v193
  %572 = vmatmul.f32.gmra.mxu0 %v20
  %v573 = vpop.f32.mrf.mxu0
  %v574 = vadd.f32 %v551, %v573
  %575 = vmatmul.f32.gmra.mxu0 %v39
  %v576 = vpop.f32.mrf.mxu0
  %v577 = vadd.f32 %v554, %v576
  %578 = vdwg.mxu0
  %579 = vmatpush.msra.mxu0 %v224
  %580 = vmatpush.msra.mxu0 %v223
  %581 = vmatpush.msra.mxu0 %v222
  %582 = vmatpush.msra.mxu0 %v221
  %583 = vmatpush.msra.mxu0 %v220
  %584 = vmatpush.msra.mxu0 %v219
  %585 = vmatpush.msra.mxu0 %v218
  %586 = vmatpush.msra.mxu0 %v217
  %587 = vmatpush.msra.mxu0 %v216
  %588 = vmatpush.msra.mxu0 %v215
  %589 = vmatpush.msra.mxu0 %v214
  %590 = vmatpush.msra.mxu0 %v213
  %591 = vmatpush.msra.mxu0 %v212
  %592 = vmatpush.msra.mxu0 %v211
  %593 = vmatpush.msra.mxu0 %v210
  %594 = vmatpush.msra.mxu0 %v209
  %595 = vmatmul.f32.gmra.mxu0 %v21
  %v596 = vpop.f32.mrf.mxu0
  %v597 = vadd.f32 %v574, %v596
  %598 = vmatmul.f32.gmra.mxu0 %v40
  %v599 = vpop.f32.mrf.mxu0
  %v600 = vadd.f32 %v577, %v599
  %601 = vdwg.mxu0
  %602 = vmatpush.msra.mxu0 %v240
  %603 = vmatpush.msra.mxu0 %v239
  %604 = vmatpush.msra.mxu0 %v238
  %605 = vmatpush.msra.mxu0 %v237
  %606 = vmatpush.msra.mxu0 %v236
  %607 = vmatpush.msra.mxu0 %v235
  %608 = vmatpush.msra.mxu0 %v234
  %609 = vmatpush.msra.mxu0 %v233
  %610 = vmatpush.msra.mxu0 %v232
  %611 = vmatpush.msra.mxu0 %v231
  %612 = vmatpush.msra.mxu0 %v230
  %613 = vmatpush.msra.mxu0 %v229
  %614 = vmatpush.msra.mxu0 %v228
  %615 = vmatpush.msra.mxu0 %v227
  %616 = vmatpush.msra.mxu0 %v226
  %617 = vmatpush.msra.mxu0 %v225
  %618 = vmatmul.f32.gmra.mxu0 %v22
  %v619 = vpop.f32.mrf.mxu0
  %v620 = vadd.f32 %v597, %v619
  %621 = vmatmul.f32.gmra.mxu0 %v41
  %v622 = vpop.f32.mrf.mxu0
  %v623 = vadd.f32 %v600, %v622
  %624 = vdwg.mxu0
  %625 = vmatpush.msra.mxu0 %v256
  %626 = vmatpush.msra.mxu0 %v255
  %627 = vmatpush.msra.mxu0 %v254
  %628 = vmatpush.msra.mxu0 %v253
  %629 = vmatpush.msra.mxu0 %v252
  %630 = vmatpush.msra.mxu0 %v251
  %631 = vmatpush.msra.mxu0 %v250
  %632 = vmatpush.msra.mxu0 %v249
  %633 = vmatpush.msra.mxu0 %v248
  %634 = vmatpush.msra.mxu0 %v247
  %635 = vmatpush.msra.mxu0 %v246
  %636 = vmatpush.msra.mxu0 %v245
  %637 = vmatpush.msra.mxu0 %v244
  %638 = vmatpush.msra.mxu0 %v243
  %639 = vmatpush.msra.mxu0 %v242
  %640 = vmatpush.msra.mxu0 %v241
  %641 = vmatmul.f32.gmra.mxu0 %v23
  %v642 = vpop.f32.mrf.mxu0
  %v643 = vadd.f32 %v620, %v642
  %644 = vmatmul.f32.gmra.mxu0 %v42
  %v645 = vpop.f32.mrf.mxu0
  %v646 = vadd.f32 %v623, %v645
  %647 = vdwg.mxu0
  %648 = vmatpush.msra.mxu0 %v272
  %649 = vmatpush.msra.mxu0 %v271
  %650 = vmatpush.msra.mxu0 %v270
  %651 = vmatpush.msra.mxu0 %v269
  %652 = vmatpush.msra.mxu0 %v268
  %653 = vmatpush.msra.mxu0 %v267
  %654 = vmatpush.msra.mxu0 %v266
  %655 = vmatpush.msra.mxu0 %v265
  %656 = vmatpush.msra.mxu0 %v264
  %657 = vmatpush.msra.mxu0 %v263
  %658 = vmatpush.msra.mxu0 %v262
  %659 = vmatpush.msra.mxu0 %v261
  %660 = vmatpush.msra.mxu0 %v260
  %661 = vmatpush.msra.mxu0 %v259
  %662 = vmatpush.msra.mxu0 %v258
  %663 = vmatpush.msra.mxu0 %v257
  %664 = vmatmul.f32.gmra.mxu0 %v24
  %v665 = vpop.f32.mrf.mxu0
  %v666 = vadd.f32 %v643, %v665
  %667 = vmatmul.f32.gmra.mxu0 %v43
  %v668 = vpop.f32.mrf.mxu0
  %v669 = vadd.f32 %v646, %v668
  %670 = vdwg.mxu0
  %671 = vmatpush.msra.mxu0 %v288
  %672 = vmatpush.msra.mxu0 %v287
  %673 = vmatpush.msra.mxu0 %v286
  %674 = vmatpush.msra.mxu0 %v285
  %675 = vmatpush.msra.mxu0 %v284
  %676 = vmatpush.msra.mxu0 %v283
  %677 = vmatpush.msra.mxu0 %v282
  %678 = vmatpush.msra.mxu0 %v281
  %679 = vmatpush.msra.mxu0 %v280
  %680 = vmatpush.msra.mxu0 %v279
  %681 = vmatpush.msra.mxu0 %v278
  %682 = vmatpush.msra.mxu0 %v277
  %683 = vmatpush.msra.mxu0 %v276
  %684 = vmatpush.msra.mxu0 %v275
  %685 = vmatpush.msra.mxu0 %v274
  %686 = vmatpush.msra.mxu0 %v273
  %687 = vmatmul.f32.gmra.mxu0 %v25
  %v688 = vpop.f32.mrf.mxu0
  %v689 = vadd.f32 %v666, %v688
  %690 = vmatmul.f32.gmra.mxu0 %v44
  %v691 = vpop.f32.mrf.mxu0
  %v692 = vadd.f32 %v669, %v691
  %693 = vdwg.mxu0
  %694 = vmatpush.msra.mxu0 %v304
  %695 = vmatpush.msra.mxu0 %v303
  %696 = vmatpush.msra.mxu0 %v302
  %697 = vmatpush.msra.mxu0 %v301
  %698 = vmatpush.msra.mxu0 %v300
  %699 = vmatpush.msra.mxu0 %v299
  %700 = vmatpush.msra.mxu0 %v298
  %701 = vmatpush.msra.mxu0 %v297
  %702 = vmatpush.msra.mxu0 %v296
  %703 = vmatpush.msra.mxu0 %v295
  %704 = vmatpush.msra.mxu0 %v294
  %705 = vmatpush.msra.mxu0 %v293
  %706 = vmatpush.msra.mxu0 %v292
  %707 = vmatpush.msra.mxu0 %v291
  %708 = vmatpush.msra.mxu0 %v290
  %709 = vmatpush.msra.mxu0 %v289
  %710 = vmatmul.f32.gmra.mxu0 %v26
  %v711 = vpop.f32.mrf.mxu0
  %v712 = vadd.f32 %v689, %v711
  %713 = vmatmul.f32.gmra.mxu0 %v45
  %v714 = vpop.f32.mrf.mxu0
  %v715 = vadd.f32 %v692, %v714
  %716 = vdwg.mxu0
  %717 = vmatpush.msra.mxu0 %v320
  %718 = vmatpush.msra.mxu0 %v319
  %719 = vmatpush.msra.mxu0 %v318
  %720 = vmatpush.msra.mxu0 %v317
  %721 = vmatpush.msra.mxu0 %v316
  %722 = vmatpush.msra.mxu0 %v315
  %723 = vmatpush.msra.mxu0 %v314
  %724 = vmatpush.msra.mxu0 %v313
  %725 = vmatpush.msra.mxu0 %v312
  %726 = vmatpush.msra.mxu0 %v311
  %727 = vmatpush.msra.mxu0 %v310
  %728 = vmatpush.msra.mxu0 %v309
  %729 = vmatpush.msra.mxu0 %v308
  %730 = vmatpush.msra.mxu0 %v307
  %731 = vmatpush.msra.mxu0 %v306
  %732 = vmatpush.msra.mxu0 %v305
  %733 = vmatmul.f32.gmra.mxu0 %v27
  %v734 = vpop.f32.mrf.mxu0
  %v735 = vadd.f32 %v712, %v734
  %736 = vmatmul.f32.gmra.mxu0 %v46
  %v737 = vpop.f32.mrf.mxu0
  %v738 = vadd.f32 %v715, %v737
  %739 = vdwg.mxu0
  %740 = vmatpush.msra.mxu0 %v336
  %741 = vmatpush.msra.mxu0 %v335
  %742 = vmatpush.msra.mxu0 %v334
  %743 = vmatpush.msra.mxu0 %v333
  %744 = vmatpush.msra.mxu0 %v332
  %745 = vmatpush.msra.mxu0 %v331
  %746 = vmatpush.msra.mxu0 %v330
  %747 = vmatpush.msra.mxu0 %v329
  %748 = vmatpush.msra.mxu0 %v328
  %749 = vmatpush.msra.mxu0 %v327
  %750 = vmatpush.msra.mxu0 %v326
  %751 = vmatpush.msra.mxu0 %v325
  %752 = vmatpush.msra.mxu0 %v324
  %753 = vmatpush.msra.mxu0 %v323
  %754 = vmatpush.msra.mxu0 %v322
  %755 = vmatpush.msra.mxu0 %v321
  %756 = vmatmul.f32.gmra.mxu0 %v28
  %v757 = vpop.f32.mrf.mxu0
  %v758 = vadd.f32 %v735, %v757
  %759 = vmatmul.f32.gmra.mxu0 %v47
  %v760 = vpop.f32.mrf.mxu0
  %v761 = vadd.f32 %v738, %v760
  %762 = vdwg.mxu0
  %763 = vmatpush.msra.mxu0 0.0
  %764 = vmatpush.msra.mxu0 0.0
  %765 = vmatpush.msra.mxu0 0.0
  %766 = vmatpush.msra.mxu0 0.0
  %767 = vmatpush.msra.mxu0 0.0
  %768 = vmatpush.msra.mxu0 0.0
  %769 = vmatpush.msra.mxu0 0.0
  %770 = vmatpush.msra.mxu0 0.0
  %771 = vmatpush.msra.mxu0 0.0
  %772 = vmatpush.msra.mxu0 0.0
  %773 = vmatpush.msra.mxu0 0.0
  %774 = vmatpush.msra.mxu0 0.0
  %775 = vmatpush.msra.mxu0 0.0
  %776 = vmatpush.msra.mxu0 0.0
  %777 = vmatpush.msra.mxu0 0.0
  %778 = vmatpush.msra.mxu0 %v347
  %779 = vmatmul.f32.gmra.mxu0 %v340
  %v780 = vpop.f32.mrf.mxu0
  %v781 = vadd.f32 %v758, %v780
  %782 = vmatmul.f32.gmra.mxu0 %v343
  %v783 = vpop.f32.mrf.mxu0
  %v784 = vadd.f32 %v761, %v783
  %785 = vdwg.mxu0
  %786 = vst.msk [vmem:[%s2] sm:$0xff] %vm338, %v781
  %787 = vst.msk [vmem:[%s2 + $0x8] sm:$0xff] %vm338, %v784
  // Predicated region
  $region10: #{tpu_custom_call.1} parent=0 // pred_check
    _
  $region11: #{tpu_custom_call.1} parent=0 // pred_check_branch
    %789 = sbr.rel (0) target = $region13
  $region12: #{tpu_custom_call.1} parent=0 // pred_region
    _
  $region13: #{tpu_custom_call.1} parent=0 // pred_fallthru
    _
  // Predicated region
  $region14: #{tpu_custom_call.1} parent=0 // pred_check
    _
  $region15: #{tpu_custom_call.1} parent=0 // pred_check_branch
    %791 = sbr.rel (0) target = $region17
  $region16: #{tpu_custom_call.1} parent=0 // pred_region
    _
  $region17: #{tpu_custom_call.1} parent=0 // pred_fallthru
    _

</llo_original>
